<compile_context>
chip_gen: v5e
topology: v5e:2x2
jax: 0.10.0
libtpu: 0.0.40
codegen_flags: <defaults>
</compile_context>

<pallas_src>
import functools

import jax
import jax.numpy as jnp
import numpy as np
from jax.experimental import pallas as pl
from jax.experimental.pallas import tpu as pltpu

HIDDEN_SIZE = 15
OUTPUT_SIZE = 2
LANE = 128      # lane-padded width for every layer
SUBLANE = 8


def _round_up(n, m):
    return (n + m - 1) // m * m


def _mlp_kernel(x_ref, w1_ref, b1_ref, w2_ref, b2_ref, w3_ref, b3_ref,
                out_ref, hid_ref):
    x = x_ref[...]

    # fc1 + ReLU  (padded columns of w1/b1 are zero -> padded lanes of h1 stay exactly 0)
    h1 = jnp.dot(x, w1_ref[...], preferred_element_type=jnp.float32) + b1_ref[...]
    h1 = jnp.maximum(h1, 0.0)
    hid_ref[...] = h1.astype(hid_ref.dtype)          # lane-dense 128-wide store

    # fc2 + ReLU  (padded rows/cols of w2, padded b2 are zero)
    h2 = jnp.dot(h1, w2_ref[...], preferred_element_type=jnp.float32) + b2_ref[...]
    h2 = jnp.maximum(h2, 0.0)

    # fc3 (no activation)
    y = jnp.dot(h2, w3_ref[...], preferred_element_type=jnp.float32) + b3_ref[...]
    out_ref[...] = y.astype(out_ref.dtype)           # lane-dense 128-wide store


def _pad_cols(a, cols):
    return jnp.pad(a, ((0, 0), (0, cols - a.shape[1])))


def _pad_rows(a, rows):
    return jnp.pad(a, ((0, rows - a.shape[0]), (0, 0)))


@functools.partial(jax.jit, static_argnames=("block_b",))
def base_model_forward(x, params, block_b=256):
    """Pallas implementation of BaseModel.forward. Returns (out, hidden_output)."""
    w1, b1, w2, b2, w3, b3 = params
    B, in_size = x.shape

    # Zero-pad every layer's output width to 128 (math is unchanged).
    w1p = _pad_cols(w1, LANE)                        # (in, 128)
    b1p = _pad_cols(b1, LANE)                        # (1, 128)
    w2p = _pad_cols(_pad_rows(w2, LANE), LANE)       # (128, 128)
    b2p = _pad_cols(b2, LANE)                        # (1, 128)
    w3p = _pad_cols(_pad_rows(w3, LANE), LANE)       # (128, 128)
    b3p = _pad_cols(b3, LANE)                        # (1, 128)

    # Batch tiling: tile is a multiple of 8; pad batch so the grid divides evenly.
    tb = min(block_b, _round_up(B, SUBLANE))
    b_pad = _round_up(B, tb)
    if b_pad != B:
        x = jnp.pad(x, ((0, b_pad - B), (0, 0)))
    grid = (b_pad // tb,)

    resident = lambda i: (0, 0)                      # weights/biases DMA'd once, stay in VMEM

    out, hidden = pl.pallas_call(
        _mlp_kernel,
        out_shape=(
            jax.ShapeDtypeStruct((b_pad, LANE), jnp.float32),
            jax.ShapeDtypeStruct((b_pad, LANE), jnp.float32),
        ),
        grid=grid,
        in_specs=[
            pl.BlockSpec((tb, in_size), lambda i: (i, 0)),   # x: pipelined over batch
            pl.BlockSpec((in_size, LANE), resident),         # w1
            pl.BlockSpec((1, LANE), resident),               # b1
            pl.BlockSpec((LANE, LANE), resident),            # w2
            pl.BlockSpec((1, LANE), resident),               # b2
            pl.BlockSpec((LANE, LANE), resident),            # w3
            pl.BlockSpec((1, LANE), resident),               # b3
        ],
        out_specs=(
            pl.BlockSpec((tb, LANE), lambda i: (i, 0)),
            pl.BlockSpec((tb, LANE), lambda i: (i, 0)),
        ),
        compiler_params=pltpu.CompilerParams(
            dimension_semantics=("parallel",)),              # shard batch across TCs (v7x)
    )(x, w1p, b1p, w2p, b2p, w3p, b3p)

    # Slice valid rows / lanes back out (lane-dense writes happened inside the kernel).
    return out[:B, :OUTPUT_SIZE], hidden[:B, :HIDDEN_SIZE]


def init_params(key, input_size, hidden_size, output_size):
    """Deterministic init mimicking nn.Linear's uniform(-1/sqrt(fan_in), 1/sqrt(fan_in))."""
    ks = jax.random.split(key, 6)

    def linear(kw, kb, fan_in, fan_out):
        bound = 1.0 / np.sqrt(fan_in)
        w = jax.random.uniform(kw, (fan_in, fan_out), jnp.float32, -bound, bound)
        b = jax.random.uniform(kb, (1, fan_out), jnp.float32, -bound, bound)
        return w, b

    w1, b1 = linear(ks[0], ks[1], input_size, hidden_size)
    w2, b2 = linear(ks[2], ks[3], hidden_size, hidden_size)
    w3, b3 = linear(ks[4], ks[5], hidden_size, output_size)
    return (w1, b1, w2, b2, w3, b3)


def reference_forward(x, params):
    w1, b1, w2, b2, w3, b3 = params
    h1 = jnp.maximum(x @ w1 + b1, 0.0)
    h2 = jnp.maximum(h1 @ w2 + b2, 0.0)
    return h2 @ w3 + b3, h1


if __name__ == "__main__":
    batch = 8
    input_size = 32

    key = jax.random.PRNGKey(0)
    k_params, k_x = jax.random.split(key)
    params = init_params(k_params, input_size, HIDDEN_SIZE, OUTPUT_SIZE)
    x = jax.random.normal(k_x, (batch, input_size), jnp.float32)

    out, hidden = base_model_forward(x, params)
    jax.block_until_ready((out, hidden))

    ref_out, ref_hidden = reference_forward(x, params)
    np.testing.assert_allclose(np.asarray(out), np.asarray(ref_out), rtol=1e-5, atol=1e-5)
    np.testing.assert_allclose(np.asarray(hidden), np.asarray(ref_hidden), rtol=1e-5, atol=1e-5)

    print("KERNEL_OK")
</pallas_src>

<mosaic_0001>
module attributes {stable_mosaic.version = 11 : i64} {
  func.func @_mlp_kernel(%arg0: i32, %arg1: memref<8x32xf32, #tpu.memory_space<vmem>>, %arg2: memref<32x128xf32, #tpu.memory_space<vmem>>, %arg3: memref<1x128xf32, #tpu.memory_space<vmem>>, %arg4: memref<128x128xf32, #tpu.memory_space<vmem>>, %arg5: memref<1x128xf32, #tpu.memory_space<vmem>>, %arg6: memref<128x128xf32, #tpu.memory_space<vmem>>, %arg7: memref<1x128xf32, #tpu.memory_space<vmem>>, %arg8: memref<8x128xf32, #tpu.memory_space<vmem>>, %arg9: memref<8x128xf32, #tpu.memory_space<vmem>>) attributes {dimension_semantics = [#tpu.dimension_semantics<parallel>], iteration_bounds = array<i64: 1>, scalar_prefetch = 0 : i64, scratch_operands = 0 : i64, tpu.core_type = #tpu.core_type<tc>, window_params = [{transform_indices = @transform_0, window_bounds = array<i64: 8, 32>}, {pipeline_mode = #tpu.pipeline_mode<synchronous>, transform_indices = @transform_1, window_bounds = array<i64: 32, 128>}, {pipeline_mode = #tpu.pipeline_mode<synchronous>, transform_indices = @transform_2, window_bounds = array<i64: 1, 128>}, {pipeline_mode = #tpu.pipeline_mode<synchronous>, transform_indices = @transform_3, window_bounds = array<i64: 128, 128>}, {pipeline_mode = #tpu.pipeline_mode<synchronous>, transform_indices = @transform_4, window_bounds = array<i64: 1, 128>}, {pipeline_mode = #tpu.pipeline_mode<synchronous>, transform_indices = @transform_5, window_bounds = array<i64: 128, 128>}, {pipeline_mode = #tpu.pipeline_mode<synchronous>, transform_indices = @transform_6, window_bounds = array<i64: 1, 128>}, {transform_indices = @transform_7, window_bounds = array<i64: 8, 128>}, {transform_indices = @transform_8, window_bounds = array<i64: 8, 128>}]} {
    %c0 = arith.constant 0 : index
    %c0_0 = arith.constant 0 : index
    %0 = vector.load %arg1[%c0, %c0_0] : memref<8x32xf32, #tpu.memory_space<vmem>>, vector<8x32xf32>
    %c0_1 = arith.constant 0 : index
    %c0_2 = arith.constant 0 : index
    %1 = vector.load %arg2[%c0_1, %c0_2] : memref<32x128xf32, #tpu.memory_space<vmem>>, vector<32x128xf32>
    %cst = arith.constant dense<0.000000e+00> : vector<8x128xf32>
    %2 = tpu.matmul %0, %1, %cst {dimension_numbers = #tpu.dot_dimension_numbers<[1], [0], [0], [1], [0, 0, 1, 1], [], []>} : vector<8x32xf32>, vector<32x128xf32>, vector<8x128xf32> -> vector<8x128xf32>
    %c0_3 = arith.constant 0 : index
    %c0_4 = arith.constant 0 : index
    %3 = vector.load %arg3[%c0_3, %c0_4] : memref<1x128xf32, #tpu.memory_space<vmem>>, vector<1x128xf32>
    %4 = vector.broadcast %3 : vector<1x128xf32> to vector<8x128xf32>
    %5 = arith.addf %2, %4 : vector<8x128xf32>
    %cst_5 = arith.constant 0.000000e+00 : f32
    %6 = vector.broadcast %cst_5 : f32 to vector<8x128xf32>
    %7 = arith.maximumf %5, %6 : vector<8x128xf32>
    %c0_6 = arith.constant 0 : index
    %c0_7 = arith.constant 0 : index
    %8 = vector.load %arg9[%c0_6, %c0_7] : memref<8x128xf32, #tpu.memory_space<vmem>>, vector<8x128xf32>
    tpu.vector_store %arg9[%c0_6, %c0_7], %7 {strides = array<i32>} : memref<8x128xf32, #tpu.memory_space<vmem>>, vector<8x128xf32>,
    %c0_8 = arith.constant 0 : index
    %c0_9 = arith.constant 0 : index
    %9 = vector.load %arg4[%c0_8, %c0_9] : memref<128x128xf32, #tpu.memory_space<vmem>>, vector<128x128xf32>
    %cst_10 = arith.constant dense<0.000000e+00> : vector<8x128xf32>
    %10 = tpu.matmul %7, %9, %cst_10 {dimension_numbers = #tpu.dot_dimension_numbers<[1], [0], [0], [1], [0, 0, 1, 1], [], []>} : vector<8x128xf32>, vector<128x128xf32>, vector<8x128xf32> -> vector<8x128xf32>
    %c0_11 = arith.constant 0 : index
    %c0_12 = arith.constant 0 : index
    %11 = vector.load %arg5[%c0_11, %c0_12] : memref<1x128xf32, #tpu.memory_space<vmem>>, vector<1x128xf32>
    %12 = vector.broadcast %11 : vector<1x128xf32> to vector<8x128xf32>
    %13 = arith.addf %10, %12 : vector<8x128xf32>
    %cst_13 = arith.constant 0.000000e+00 : f32
    %14 = vector.broadcast %cst_13 : f32 to vector<8x128xf32>
    %15 = arith.maximumf %13, %14 : vector<8x128xf32>
    %c0_14 = arith.constant 0 : index
    %c0_15 = arith.constant 0 : index
    %16 = vector.load %arg6[%c0_14, %c0_15] : memref<128x128xf32, #tpu.memory_space<vmem>>, vector<128x128xf32>
    %cst_16 = arith.constant dense<0.000000e+00> : vector<8x128xf32>
    %17 = tpu.matmul %15, %16, %cst_16 {dimension_numbers = #tpu.dot_dimension_numbers<[1], [0], [0], [1], [0, 0, 1, 1], [], []>} : vector<8x128xf32>, vector<128x128xf32>, vector<8x128xf32> -> vector<8x128xf32>
    %c0_17 = arith.constant 0 : index
    %c0_18 = arith.constant 0 : index
    %18 = vector.load %arg7[%c0_17, %c0_18] : memref<1x128xf32, #tpu.memory_space<vmem>>, vector<1x128xf32>
    %19 = vector.broadcast %18 : vector<1x128xf32> to vector<8x128xf32>
    %20 = arith.addf %17, %19 : vector<8x128xf32>
    %c0_19 = arith.constant 0 : index
    %c0_20 = arith.constant 0 : index
    %21 = vector.load %arg8[%c0_19, %c0_20] : memref<8x128xf32, #tpu.memory_space<vmem>>, vector<8x128xf32>
    tpu.vector_store %arg8[%c0_19, %c0_20], %20 {strides = array<i32>} : memref<8x128xf32, #tpu.memory_space<vmem>>, vector<8x128xf32>,
    return
  }
  func.func @transform_0(%arg0: i32) -> (i32, i32) {
    %c0_i32 = arith.constant 0 : i32
    %c0_i32_0 = arith.constant 0 : i32
    return %arg0, %c0_i32 : i32, i32
  }
  func.func @transform_1(%arg0: i32) -> (i32, i32) {
    %c0_i32 = arith.constant 0 : i32
    %c0_i32_0 = arith.constant 0 : i32
    %c0_i32_1 = arith.constant 0 : i32
    return %c0_i32, %c0_i32_0 : i32, i32
  }
  func.func @transform_2(%arg0: i32) -> (i32, i32) {
    %c0_i32 = arith.constant 0 : i32
    %c0_i32_0 = arith.constant 0 : i32
    %c0_i32_1 = arith.constant 0 : i32
    return %c0_i32, %c0_i32_0 : i32, i32
  }
  func.func @transform_3(%arg0: i32) -> (i32, i32) {
    %c0_i32 = arith.constant 0 : i32
    %c0_i32_0 = arith.constant 0 : i32
    %c0_i32_1 = arith.constant 0 : i32
    return %c0_i32, %c0_i32_0 : i32, i32
  }
  func.func @transform_4(%arg0: i32) -> (i32, i32) {
    %c0_i32 = arith.constant 0 : i32
    %c0_i32_0 = arith.constant 0 : i32
    %c0_i32_1 = arith.constant 0 : i32
    return %c0_i32, %c0_i32_0 : i32, i32
  }
  func.func @transform_5(%arg0: i32) -> (i32, i32) {
    %c0_i32 = arith.constant 0 : i32
    %c0_i32_0 = arith.constant 0 : i32
    %c0_i32_1 = arith.constant 0 : i32
    return %c0_i32, %c0_i32_0 : i32, i32
  }
  func.func @transform_6(%arg0: i32) -> (i32, i32) {
    %c0_i32 = arith.constant 0 : i32
    %c0_i32_0 = arith.constant 0 : i32
    %c0_i32_1 = arith.constant 0 : i32
    return %c0_i32, %c0_i32_0 : i32, i32
  }
  func.func @transform_7(%arg0: i32) -> (i32, i32) {
    %c0_i32 = arith.constant 0 : i32
    %c0_i32_0 = arith.constant 0 : i32
    return %arg0, %c0_i32 : i32, i32
  }
  func.func @transform_8(%arg0: i32) -> (i32, i32) {
    %c0_i32 = arith.constant 0 : i32
    %c0_i32_0 = arith.constant 0 : i32
    return %arg0, %c0_i32 : i32, i32
  }
}

</mosaic_0001>

<llo_original>
// kernel: base_model_forward.1
$region0: #{base_model_forward.1}
  #allocation0 [shape = 'u32[]', space=smem, size = 0x4, offset = 0x4, fixed_abs, tag = 'smem constant byte address 0x4 - core index']
  #allocation1 [shape = 'u32[72,128]{1,0:T(1,128)}', space=vmem, size = 0x9000, scoped, tag = 'internal scratch']
  %s0 = inlined_call_operand.vmem [shape: f32[8,32], index: 0, kind: input, shape index: {}]
  %s1 = inlined_call_operand.vmem [shape: f32[32,128], index: 1, kind: input, shape index: {}]
  %s2 = inlined_call_operand.vmem [shape: f32[1,128], index: 2, kind: input, shape index: {}]
  %s3 = inlined_call_operand.vmem [shape: f32[128,128], index: 3, kind: input, shape index: {}]
  %s4 = inlined_call_operand.vmem [shape: f32[1,128], index: 4, kind: input, shape index: {}]
  %s5 = inlined_call_operand.vmem [shape: f32[128,128], index: 5, kind: input, shape index: {}]
  %s6 = inlined_call_operand.vmem [shape: f32[1,128], index: 6, kind: input, shape index: {}]
  %s7 = inlined_call_operand.vmem [shape: f32[8,128], index: 7, kind: output, shape index: {0}]
  %s8 = inlined_call_operand.hbm [shape: f32[8,128], index: 8, kind: output, shape index: {1}]
  %9 = xla_tuple %s7, %s8
  %s10 = sld [smem:[#allocation0]]
  $region46: #{base_model_forward.1} parent=0
    _
  %s12 = ssub.s32 1, %s10
  %s13 = scalar_select 0, %s12, %s10
  $region1: #{base_model_forward.1} parent=0
    #allocation2 [shape = 'u8[4096]{0}', space=vmem, size = 0x1000, scoped, tag = 'output window, operand 1, single buffered']
    #allocation3 [shape = 's32[1]{0}', space=sflag, size = 0x4, scoped, tag = 'scoped memory for base_model_forward.1']
    %14 = vsyncpa [#allocation3], 0
    // Predicated region
    $region2: #{base_model_forward.1} parent=1 // pred_check
      _
    $region3: #{base_model_forward.1} parent=1 // pred_check_branch
      %16 = sbr.rel (0) target = $region5
    $region4: #{base_model_forward.1} parent=1 // pred_region
      _
    $region5: #{base_model_forward.1} parent=1 // pred_fallthru
      _
    // Predicated region
    $region6: #{base_model_forward.1} parent=1 // pred_check
      _
    $region7: #{base_model_forward.1} parent=1 // pred_check_branch
      %18 = sbr.rel (0) target = $region9
    $region8: #{base_model_forward.1} parent=1 // pred_region
      _
    $region9: #{base_model_forward.1} parent=1 // pred_fallthru
      _
    // Predicated region
    $region10: #{base_model_forward.1} parent=1 // pred_check
      _
    $region11: #{base_model_forward.1} parent=1 // pred_check_branch
      %20 = sbr.rel (0) target = $region13
    $region12: #{base_model_forward.1} parent=1 // pred_region
      _
    $region13: #{base_model_forward.1} parent=1 // pred_fallthru
      _
    // Predicated region
    $region14: #{base_model_forward.1} parent=1 // pred_check
      _
    $region15: #{base_model_forward.1} parent=1 // pred_check_branch
      %22 = sbr.rel (0) target = $region17
    $region16: #{base_model_forward.1} parent=1 // pred_region
      _
    $region17: #{base_model_forward.1} parent=1 // pred_fallthru
      _
    // Predicated region
    $region18: #{base_model_forward.1} parent=1 // pred_check
      _
    $region19: #{base_model_forward.1} parent=1 // pred_check_branch
      %24 = sbr.rel (0) target = $region21
    $region20: #{base_model_forward.1} parent=1 // pred_region
      _
    $region21: #{base_model_forward.1} parent=1 // pred_fallthru
      _
    // Predicated region
    $region22: #{base_model_forward.1} parent=1 // pred_check
      _
    $region23: #{base_model_forward.1} parent=1 // pred_check_branch
      %26 = sbr.rel (0) target = $region25
    $region24: #{base_model_forward.1} parent=1 // pred_region
      _
    $region25: #{base_model_forward.1} parent=1 // pred_fallthru
      _
    // Predicated region
    $region26: #{base_model_forward.1} parent=1 // pred_check
      _
    $region27: #{base_model_forward.1} parent=1 // pred_check_branch
      %28 = sbr.rel (0) target = $region29
    $region28: #{base_model_forward.1} parent=1 // pred_region
      _
    $region29: #{base_model_forward.1} parent=1 // pred_fallthru
      _
    %v29 = vld [vmem:[%s0] sm:$0xff]
    %v30 = vld [vmem:[%s1] sm:$0xff]
    %v31 = vld [vmem:[%s1 + $0x8] sm:$0xff]
    %v32 = vld [vmem:[%s1 + $0x10] sm:$0xff]
    %v33 = vld [vmem:[%s1 + $0x18] sm:$0xff]
    %v34 = vld [vmem:[%s2] sm:$0x1]
    %v36 = vperm.slane %v34, 0
    %vm38 = vcmask 261120
    %v40 = vsel %vm38, %v29, 0
    %42 = vmatpush.msra.mxu0 0.0
    %43 = vmatpush.msra.mxu0 0.0
    %44 = vmatpush.msra.mxu0 0.0
    %45 = vmatpush.msra.mxu0 0.0
    %46 = vmatpush.msra.mxu0 0.0
    %47 = vmatpush.msra.mxu0 0.0
    %48 = vmatpush.msra.mxu0 0.0
    %49 = vmatpush.msra.mxu0 0.0
    %50 = vmatpush.msra.mxu0 0.0
    %51 = vmatpush.msra.mxu0 0.0
    %52 = vmatpush.msra.mxu0 0.0
    %53 = vmatpush.msra.mxu0 0.0
    %54 = vmatpush.msra.mxu0 %v33
    %55 = vmatpush.msra.mxu0 %v32
    %56 = vmatpush.msra.mxu0 %v31
    %57 = vmatpush.msra.mxu0 %v30
    %58 = vmatmul.f32.gmra.mxu0 %v40
    %v59 = vpop.f32.mrf.mxu0
    %v60 = vadd.f32 %v36, %v59
    %61 = vdwg.mxu0
    %v62 = vmax.f32 %v60, 0.0
    %63 = vst [vmem:[#allocation2] sm:$0xff] %v62
    %v64 = vld [vmem:[%s3] sm:$0xff]
    %v65 = vld [vmem:[%s3 + $0x8] sm:$0xff]
    %v66 = vld [vmem:[%s3 + $0x10] sm:$0xff]
    %v67 = vld [vmem:[%s3 + $0x18] sm:$0xff]
    %v68 = vld [vmem:[%s3 + $0x20] sm:$0xff]
    %v69 = vld [vmem:[%s3 + $0x28] sm:$0xff]
    %v70 = vld [vmem:[%s3 + $0x30] sm:$0xff]
    %v71 = vld [vmem:[%s3 + $0x38] sm:$0xff]
    %v72 = vld [vmem:[%s3 + $0x40] sm:$0xff]
    %v73 = vld [vmem:[%s3 + $0x48] sm:$0xff]
    %v74 = vld [vmem:[%s3 + $0x50] sm:$0xff]
    %v75 = vld [vmem:[%s3 + $0x58] sm:$0xff]
    %v76 = vld [vmem:[%s3 + $0x60] sm:$0xff]
    %v77 = vld [vmem:[%s3 + $0x68] sm:$0xff]
    %v78 = vld [vmem:[%s3 + $0x70] sm:$0xff]
    %v79 = vld [vmem:[%s3 + $0x78] sm:$0xff]
    %v80 = vld [vmem:[%s4] sm:$0x1]
    %v82 = vperm.slane %v80, 0
    %84 = vmatpush.msra.mxu0 %v79
    %85 = vmatpush.msra.mxu0 %v78
    %86 = vmatpush.msra.mxu0 %v77
    %87 = vmatpush.msra.mxu0 %v76
    %88 = vmatpush.msra.mxu0 %v75
    %89 = vmatpush.msra.mxu0 %v74
    %90 = vmatpush.msra.mxu0 %v73
    %91 = vmatpush.msra.mxu0 %v72
    %92 = vmatpush.msra.mxu0 %v71
    %93 = vmatpush.msra.mxu0 %v70
    %94 = vmatpush.msra.mxu0 %v69
    %95 = vmatpush.msra.mxu0 %v68
    %96 = vmatpush.msra.mxu0 %v67
    %97 = vmatpush.msra.mxu0 %v66
    %98 = vmatpush.msra.mxu0 %v65
    %99 = vmatpush.msra.mxu0 %v64
    %100 = vmatmul.f32.gmra.mxu0 %v62
    %v101 = vpop.f32.mrf.mxu0
    %v102 = vadd.f32 %v82, %v101
    %103 = vdwg.mxu0
    %v104 = vmax.f32 %v102, 0.0
    %v105 = vld [vmem:[%s5] sm:$0xff]
    %v106 = vld [vmem:[%s5 + $0x8] sm:$0xff]
    %v107 = vld [vmem:[%s5 + $0x10] sm:$0xff]
    %v108 = vld [vmem:[%s5 + $0x18] sm:$0xff]
    %v109 = vld [vmem:[%s5 + $0x20] sm:$0xff]
    %v110 = vld [vmem:[%s5 + $0x28] sm:$0xff]
    %v111 = vld [vmem:[%s5 + $0x30] sm:$0xff]
    %v112 = vld [vmem:[%s5 + $0x38] sm:$0xff]
    %v113 = vld [vmem:[%s5 + $0x40] sm:$0xff]
    %v114 = vld [vmem:[%s5 + $0x48] sm:$0xff]
    %v115 = vld [vmem:[%s5 + $0x50] sm:$0xff]
    %v116 = vld [vmem:[%s5 + $0x58] sm:$0xff]
    %v117 = vld [vmem:[%s5 + $0x60] sm:$0xff]
    %v118 = vld [vmem:[%s5 + $0x68] sm:$0xff]
    %v119 = vld [vmem:[%s5 + $0x70] sm:$0xff]
    %v120 = vld [vmem:[%s5 + $0x78] sm:$0xff]
    %v121 = vld [vmem:[%s6] sm:$0x1]
    %v123 = vperm.slane %v121, 0
    %125 = vmatpush.msra.mxu0 %v120
    %126 = vmatpush.msra.mxu0 %v119
    %127 = vmatpush.msra.mxu0 %v118
    %128 = vmatpush.msra.mxu0 %v117
    %129 = vmatpush.msra.mxu0 %v116
    %130 = vmatpush.msra.mxu0 %v115
    %131 = vmatpush.msra.mxu0 %v114
    %132 = vmatpush.msra.mxu0 %v113
    %133 = vmatpush.msra.mxu0 %v112
    %134 = vmatpush.msra.mxu0 %v111
    %135 = vmatpush.msra.mxu0 %v110
    %136 = vmatpush.msra.mxu0 %v109
    %137 = vmatpush.msra.mxu0 %v108
    %138 = vmatpush.msra.mxu0 %v107
    %139 = vmatpush.msra.mxu0 %v106
    %140 = vmatpush.msra.mxu0 %v105
    %141 = vmatmul.f32.gmra.mxu0 %v104
    %v142 = vpop.f32.mrf.mxu0
    %v143 = vadd.f32 %v123, %v142
    %144 = vdwg.mxu0
    %145 = vst [vmem:[%s7] sm:$0xff] %v143
    // Predicated region
    $region30: #{base_model_forward.1} parent=1 // pred_check
      _
    $region31: #{base_model_forward.1} parent=1 // pred_check_branch
      %147 = sbr.rel (0) target = $region33
    $region32: #{base_model_forward.1} parent=1 // pred_region
      _
    $region33: #{base_model_forward.1} parent=1 // pred_fallthru
      _
    // Predicated region
    $region34: #{base_model_forward.1} parent=1 // pred_check
      _
    $region35: #{base_model_forward.1} parent=1 // pred_check_branch
      %149 = sbr.rel (0) target = $region37
    $region36: #{base_model_forward.1} parent=1 // pred_region
      %151 = vsyncadd [#allocation3], 0
      %s153 = sshll.u32 [#allocation2], 4
      %s154 = int_to_ptr.vmem [resolvable:$true] %s153
      %s155 = sshll.u32 %s8, 4
      %s156 = int_to_ptr.hbm [resolvable:$true] %s155
      %158 = dma.vmem_to_hbm [thread:$0]  %s154, 128, %s156, [#allocation3]
    $region37: #{base_model_forward.1} parent=1 // pred_fallthru
      _
    // Predicated region
    $region38: #{base_model_forward.1} parent=1 // pred_check
      _
    $region39: #{base_model_forward.1} parent=1 // pred_check_branch
      %160 = sbr.rel (0) target = $region41
    $region40: #{base_model_forward.1} parent=1 // pred_region
      _
    $region41: #{base_model_forward.1} parent=1 // pred_fallthru
      _
    // Predicated region
    $region42: #{base_model_forward.1} parent=1 // pred_check
      _
    $region43: #{base_model_forward.1} parent=1 // pred_check_branch
      %162 = sbr.rel (0) target = $region45
    $region44: #{base_model_forward.1} parent=1 // pred_region
      %164 = dma.done [#allocation3], 128
    $region45: #{base_model_forward.1} parent=1 // pred_fallthru
      _
    %165 = vsyncpa [#allocation3], 1

</llo_original>
